<compile_context>
chip_gen: v5e
topology: v5e:2x2
jax: 0.10.0
libtpu: 0.0.40
codegen_flags: <defaults>
</compile_context>

<pallas_src>
import jax
import jax.numpy as jnp
from jax.experimental import pallas as pl
from jax.experimental.pallas import tpu as pltpu


# ----------------------------- config ---------------------------------------
ENT_DIM = 32          # config.ent_dim
REL_DIM = 32          # config.rel_dim (must equal ent_dim for DistMult's product)
GAMMA = 12.0          # config.gamma (registered buffer; unused by DistMult.forward)
EMBD_DTYPE = jnp.bfloat16   # storage / HBM-stream dtype for embeddings


def _round_up(x, m):
    return (x + m - 1) // m * m


# ----------------------------- Pallas kernel --------------------------------
def _distmult_score_kernel(w_ref, neg_ref, out_ref):
    # w_ref:   (tb, 1, D)   broadcast factor (h*r or r*t), D on lanes
    # neg_ref: (tb, tn, D)  gathered negative embeddings, natural layout
    # out_ref: (tb, tn)     lane-dense DistMult scores
    w = w_ref[...].astype(jnp.float32)            # (tb, 1, D)
    x = neg_ref[...].astype(jnp.float32)          # (tb, tn, D)  f32 accumulation
    out_ref[...] = jnp.sum(x * w, axis=-1).astype(out_ref.dtype)


def _pick_tiles(B, N, itemsize, tb, tn):
    # lane-dense N tile (output last dim a multiple of 128)
    if tn is None:
        tn = min(1024, _round_up(N, 128))
    assert tn % 128 == 0 or tn == N, "N tile must be lane-dense (multiple of 128)"

    if tb is None:
        # Grow tb from the VMEM budget alone (B is padded via the cheap index
        # array, so no divisibility constraint); cap padding waste for small B.
        # Budget counts the lane-padded VMEM footprint (D=32 padded to 128
        # lanes), double-buffered input stays well under the 32 MiB scoped
        # limit on every generation (incl. v7x's 64 MiB physical VMEM).
        per_buf_budget = 2 * 1024 * 1024
        tb = 8
        while (tb * 2 <= 64
               and _round_up(B, tb * 2) - B <= max(8, B // 4)
               and (tb * 2) * tn * 128 * itemsize <= per_buf_budget):
            tb *= 2
    assert tb % 8 == 0, "batch tile must be sublane-aligned (multiple of 8)"

    Bp = _round_up(B, tb)
    Np = _round_up(N, tn)

    # Megacore guard (v7x has 2 TensorCores): avoid a 1x1 grid when N can be
    # split into >=2 lane-dense tiles.
    if Bp // tb == 1 and Np // tn == 1 and N > 128:
        tn = max(128, _round_up(-(-N // 2), 128))
        Np = _round_up(N, tn)
    return tb, tn, Bp, Np


def distmult_neg_scores(w, ent_table, neg_idx, *, tb=None, tn=None):
    """score[b, n] = <w[b, :], ent_table[neg_idx[b, n], :]>  (f32 accumulation).

    w:         (B, D)  float32 broadcast factor per batch row (h*r or r*t)
    ent_table: (E, D)  entity embedding table (bf16 recommended)
    neg_idx:   (B, N)  int32 entity indices
    returns    (B, N)  float32
    """
    B, D = w.shape
    Bn, N = neg_idx.shape
    assert Bn == B, (w.shape, neg_idx.shape)
    itemsize = jnp.dtype(ent_table.dtype).itemsize
    tb, tn, Bp, Np = _pick_tiles(B, N, itemsize, tb, tn)

    # Pad the *index* array (cheap int32, 1/16th the bytes of the bf16 rows) so
    # the gathered operand is born padded -- no jnp.pad of the big array.
    if (Bp, Np) != (B, N):
        neg_idx = jnp.pad(neg_idx, ((0, Bp - B), (0, Np - N)))   # index 0 is valid
    if Bp != B:
        w = jnp.pad(w, ((0, Bp - B), (0, 0)))

    # Gather in the natural (B, N, D) layout; no swapaxes, no pad of the big array.
    # TODO(synk): fuse this gather into the kernel (VMEM-resident table or
    # scalar-prefetch DMA gather) to drop the remaining HBM write+read of neg_embd.
    neg_embd = jnp.take(ent_table, neg_idx, axis=0)              # (Bp, Np, D)

    w3 = w.reshape(Bp, 1, D)   # D on lanes inside the kernel -> pure sublane broadcast

    grid = (Bp // tb, Np // tn)
    out = pl.pallas_call(
        _distmult_score_kernel,
        out_shape=jax.ShapeDtypeStruct((Bp, Np), jnp.float32),
        grid=grid,
        in_specs=[
            pl.BlockSpec((tb, 1, D), lambda i, j: (i, 0, 0)),
            pl.BlockSpec((tb, tn, D), lambda i, j: (i, j, 0)),
        ],
        out_specs=pl.BlockSpec((tb, tn), lambda i, j: (i, j)),
        compiler_params=pltpu.CompilerParams(
            # both axes independent: each output tile written exactly once
            dimension_semantics=("parallel", "parallel"),
            vmem_limit_bytes=32 * 1024 * 1024,
        ),
    )(w3, neg_embd)
    return out[:B, :N]


# ----------------------------- model glue -----------------------------------
def xavier_uniform(key, shape):
    # torch.nn.init.xavier_uniform_ for a 2D weight: fan_out, fan_in = shape
    fan_out, fan_in = shape
    bound = (6.0 / (fan_in + fan_out)) ** 0.5
    return jax.random.uniform(key, shape, jnp.float32, minval=-bound, maxval=bound)


def make_params(key, ent_num, rel_num, dtype=EMBD_DTYPE):
    k_ent, k_rel = jax.random.split(key)
    return {
        # bf16 storage halves the HBM read volume of the dominant stream;
        # the kernel accumulates in f32.
        "ent_embd": xavier_uniform(k_ent, (ent_num, ENT_DIM)).astype(dtype),
        "rel_embd": xavier_uniform(k_rel, (rel_num, REL_DIM)).astype(dtype),
        "gamma": jnp.float32(GAMMA),                              # buffer (unused in fwd)
        "ents": jnp.arange(ent_num, dtype=jnp.int32)[None, :],    # buffer (unused in fwd)
    }


def _renorm_max_norm(v, max_norm=1.0):
    # nn.Embedding(max_norm=1.0): looked-up rows with L2 norm > max_norm get rescaled.
    # TODO(synk): PyTorch renormalizes the stored weight rows in place (affects later
    # lookups / training); here only the looked-up values are rescaled (fwd matches).
    n = jnp.linalg.norm(v, axis=-1, keepdims=True)
    scale = jnp.where(n > max_norm, max_norm / (n + 1e-7), 1.0)
    return v * scale


def distmult_forward(params, pos_sample, neg_sample=None, mode=None):
    """pos_sample: (B, 3) int32 [head, rel, tail]; neg_sample: (B, N) int32 or None."""
    ent_w = params["ent_embd"]
    rel_w = params["rel_embd"]

    h = jnp.take(ent_w, pos_sample[:, 0], axis=0).astype(jnp.float32)                  # (B, D)
    r = _renorm_max_norm(jnp.take(rel_w, pos_sample[:, 1], axis=0).astype(jnp.float32))
    t = jnp.take(ent_w, pos_sample[:, 2], axis=0).astype(jnp.float32)                  # (B, D)

    if neg_sample is not None:
        if mode == "head-batch":
            w = r * t            # score = neg_embd * (r * t)
        elif mode == "tail-batch":
            w = h * r            # score = (h * r) * neg_embd
        else:
            raise ValueError("mode %s not supported" % mode)
        return distmult_neg_scores(w, ent_w, neg_sample.astype(jnp.int32))             # (B, N)
    else:
        # Positive-only path: tiny (B, 1), lane-width-1 output -> plain JAX.
        return jnp.sum(h * r * t, axis=-1, keepdims=True)                              # (B, 1)


# ----------------------------- reference ------------------------------------
def distmult_forward_ref(params, pos_sample, neg_sample=None, mode=None):
    ent_w = params["ent_embd"].astype(jnp.float32)
    rel_w = params["rel_embd"].astype(jnp.float32)
    h = jnp.take(ent_w, pos_sample[:, 0], axis=0)[:, None, :]
    r = _renorm_max_norm(jnp.take(rel_w, pos_sample[:, 1], axis=0))[:, None, :]
    t = jnp.take(ent_w, pos_sample[:, 2], axis=0)[:, None, :]
    if neg_sample is not None:
        neg = jnp.take(ent_w, neg_sample, axis=0)
        score = neg * (r * t) if mode == "head-batch" else h * r * neg
    else:
        score = h * r * t
    return jnp.sum(score, axis=-1)


# ----------------------------- main -----------------------------------------
if __name__ == "__main__":
    key = jax.random.PRNGKey(0)
    k_param, k_pos, k_neg, k_param2, k_pos2, k_neg2, k_w = jax.random.split(key, 7)

    # --- small demo shapes --------------------------------------------------
    ent_num, rel_num, B, N = 10, 5, 2, 8
    params = make_params(k_param, ent_num, rel_num)

    heads = jax.random.randint(k_pos, (B, 1), 0, ent_num)
    rels = jax.random.randint(jax.random.fold_in(k_pos, 1), (B, 1), 0, rel_num)
    tails = jax.random.randint(jax.random.fold_in(k_pos, 2), (B, 1), 0, ent_num)
    pos_sample = jnp.concatenate([heads, rels, tails], axis=1).astype(jnp.int32)  # (B, 3)
    neg_sample = jax.random.randint(k_neg, (B, N), 0, ent_num).astype(jnp.int32)  # (B, N)

    s_pos = distmult_forward(params, pos_sample)                                  # (B, 1)
    s_head = distmult_forward(params, pos_sample, neg_sample, mode="head-batch")  # (B, N)
    s_tail = distmult_forward(params, pos_sample, neg_sample, mode="tail-batch")  # (B, N)
    jax.block_until_ready((s_pos, s_head, s_tail))

    assert s_pos.shape == (B, 1) and s_head.shape == (B, N) and s_tail.shape == (B, N)
    assert jnp.allclose(s_pos, distmult_forward_ref(params, pos_sample),
                        atol=1e-4, rtol=1e-4)
    assert jnp.allclose(
        s_head, distmult_forward_ref(params, pos_sample, neg_sample, "head-batch"),
        atol=1e-4, rtol=1e-4)
    assert jnp.allclose(
        s_tail, distmult_forward_ref(params, pos_sample, neg_sample, "tail-batch"),
        atol=1e-4, rtol=1e-4)

    # --- ragged shapes through the full model path: B=20 -> 24, N=300 -> 384 ---
    ent_num2, rel_num2, B2, N2 = 64, 7, 20, 300
    params2 = make_params(k_param2, ent_num2, rel_num2)
    heads2 = jax.random.randint(k_pos2, (B2, 1), 0, ent_num2)
    rels2 = jax.random.randint(jax.random.fold_in(k_pos2, 1), (B2, 1), 0, rel_num2)
    tails2 = jax.random.randint(jax.random.fold_in(k_pos2, 2), (B2, 1), 0, ent_num2)
    pos2 = jnp.concatenate([heads2, rels2, tails2], axis=1).astype(jnp.int32)
    neg2 = jax.random.randint(k_neg2, (B2, N2), 0, ent_num2).astype(jnp.int32)

    g_head = distmult_forward(params2, pos2, neg2, mode="head-batch")
    g_tail = distmult_forward(params2, pos2, neg2, mode="tail-batch")
    jax.block_until_ready((g_head, g_tail))
    assert jnp.allclose(
        g_head, distmult_forward_ref(params2, pos2, neg2, "head-batch"),
        atol=1e-4, rtol=1e-4)
    assert jnp.allclose(
        g_tail, distmult_forward_ref(params2, pos2, neg2, "tail-batch"),
        atol=1e-4, rtol=1e-4)

    # --- explicit small tiles -> multi-tile grid (3, 3) with padding on both dims ---
    w2 = jax.random.normal(k_w, (B2, ENT_DIM), jnp.float32)
    got = distmult_neg_scores(w2, params2["ent_embd"], neg2, tb=8, tn=128)
    want = jnp.einsum(
        "bd,bnd->bn", w2,
        jnp.take(params2["ent_embd"].astype(jnp.float32), neg2, axis=0))
    jax.block_until_ready(got)
    assert jnp.allclose(got, want, atol=1e-4, rtol=1e-4)

    print("KERNEL_OK")
</pallas_src>

<mosaic_0001>
module attributes {stable_mosaic.version = 11 : i64} {
  func.func @_distmult_score_kernel(%arg0: i32, %arg1: i32, %arg2: memref<8x1x32xf32, #tpu.memory_space<vmem>>, %arg3: memref<8x128x32xbf16, #tpu.memory_space<vmem>>, %arg4: memref<8x128xf32, #tpu.memory_space<vmem>>) attributes {dimension_semantics = [#tpu.dimension_semantics<parallel>, #tpu.dimension_semantics<parallel>], iteration_bounds = array<i64: 1, 1>, scalar_prefetch = 0 : i64, scratch_operands = 0 : i64, tpu.core_type = #tpu.core_type<tc>, window_params = [{transform_indices = @transform_0, window_bounds = array<i64: 8, 1, 32>}, {transform_indices = @transform_1, window_bounds = array<i64: 8, 128, 32>}, {transform_indices = @transform_2, window_bounds = array<i64: 8, 128>}]} {
    %c0 = arith.constant 0 : index
    %c0_0 = arith.constant 0 : index
    %c0_1 = arith.constant 0 : index
    %0 = vector.load %arg2[%c0, %c0_0, %c0_1] : memref<8x1x32xf32, #tpu.memory_space<vmem>>, vector<8x1x32xf32>
    %c0_2 = arith.constant 0 : index
    %c0_3 = arith.constant 0 : index
    %c0_4 = arith.constant 0 : index
    %1 = vector.load %arg3[%c0_2, %c0_3, %c0_4] : memref<8x128x32xbf16, #tpu.memory_space<vmem>>, vector<8x128x32xbf16>
    %2 = arith.extf %1 : vector<8x128x32xbf16> to vector<8x128x32xf32>
    %3 = vector.broadcast %0 : vector<8x1x32xf32> to vector<8x128x32xf32>
    %4 = arith.mulf %2, %3 : vector<8x128x32xf32>
    %cst = arith.constant dense<0.000000e+00> : vector<8x128xf32>
    %5 = vector.multi_reduction <add>, %4, %cst [2] : vector<8x128x32xf32> to vector<8x128xf32>
    %c0_5 = arith.constant 0 : index
    %c0_6 = arith.constant 0 : index
    %6 = vector.load %arg4[%c0_5, %c0_6] : memref<8x128xf32, #tpu.memory_space<vmem>>, vector<8x128xf32>
    tpu.vector_store %arg4[%c0_5, %c0_6], %5 {strides = array<i32>} : memref<8x128xf32, #tpu.memory_space<vmem>>, vector<8x128xf32>,
    return
  }
  func.func @transform_0(%arg0: i32, %arg1: i32) -> (i32, i32, i32) {
    %c0_i32 = arith.constant 0 : i32
    %c0_i32_0 = arith.constant 0 : i32
    %c0_i32_1 = arith.constant 0 : i32
    return %arg0, %c0_i32, %c0_i32_0 : i32, i32, i32
  }
  func.func @transform_1(%arg0: i32, %arg1: i32) -> (i32, i32, i32) {
    %c0_i32 = arith.constant 0 : i32
    %c0_i32_0 = arith.constant 0 : i32
    return %arg0, %arg1, %c0_i32 : i32, i32, i32
  }
  func.func @transform_2(%arg0: i32, %arg1: i32) -> (i32, i32) {
    %c0_i32 = arith.constant 0 : i32
    return %arg0, %arg1 : i32, i32
  }
}

</mosaic_0001>

<llo_original>
// kernel: tpu_custom_call.1
$region0: #{tpu_custom_call.1}
  #allocation0 [shape = 'u32[]', space=smem, size = 0x4, offset = 0x4, fixed_abs, tag = 'smem constant byte address 0x4 - core index']
  #allocation1 [shape = 'u32[72,128]{1,0:T(1,128)}', space=vmem, size = 0x9000, scoped, tag = 'internal scratch']
  %s0 = inlined_call_operand.vmem [shape: f32[8,1,32], index: 0, kind: input, shape index: {}]
  %s1 = inlined_call_operand.vmem [shape: bf16[8,128,32], index: 1, kind: input, shape index: {}]
  %s2 = inlined_call_operand.hbm [shape: f32[8,128], index: 2, kind: output, shape index: {}]
  %s3 = sld [smem:[#allocation0]]
  $region18: #{tpu_custom_call.1} parent=0
    _
  %s5 = ssub.s32 1, %s3
  %s6 = scalar_select 0, %s5, %s3
  $region1: #{tpu_custom_call.1} parent=0
    #allocation2 [shape = 'u8[4096]{0}', space=vmem, size = 0x1000, scoped, tag = 'output window, operand 0, single buffered']
    #allocation3 [shape = 's32[1]{0}', space=sflag, size = 0x4, scoped, tag = 'scoped memory for tpu_custom_call.1']
    %7 = vsyncpa [#allocation3], 0
    // Predicated region
    $region2: #{tpu_custom_call.1} parent=1 // pred_check
      _
    $region3: #{tpu_custom_call.1} parent=1 // pred_check_branch
      %9 = sbr.rel (0) target = $region5
    $region4: #{tpu_custom_call.1} parent=1 // pred_region
      _
    $region5: #{tpu_custom_call.1} parent=1 // pred_fallthru
      _
    // Predicated region
    $region6: #{tpu_custom_call.1} parent=1 // pred_check
      _
    $region7: #{tpu_custom_call.1} parent=1 // pred_check_branch
      %11 = sbr.rel (0) target = $region9
    $region8: #{tpu_custom_call.1} parent=1 // pred_region
      _
    $region9: #{tpu_custom_call.1} parent=1 // pred_fallthru
      _
    %v12 = vld [vmem:[%s0] sm:$0x1]
    %v13 = vld [vmem:[%s0 + $0x1] sm:$0x1]
    %v14 = vld [vmem:[%s0 + $0x2] sm:$0x1]
    %v15 = vld [vmem:[%s0 + $0x3] sm:$0x1]
    %v16 = vld [vmem:[%s0 + $0x4] sm:$0x1]
    %v17 = vld [vmem:[%s0 + $0x5] sm:$0x1]
    %v18 = vld [vmem:[%s0 + $0x6] sm:$0x1]
    %v19 = vld [vmem:[%s0 + $0x7] sm:$0x1]
    %v20 = vld [vmem:[%s1] sm:$0xf]
    %v21 = vld [vmem:[%s1 + $0x4] sm:$0xf]
    %v22 = vld [vmem:[%s1 + $0x8] sm:$0xf]
    %v23 = vld [vmem:[%s1 + $0xc] sm:$0xf]
    %v24 = vld [vmem:[%s1 + $0x10] sm:$0xf]
    %v25 = vld [vmem:[%s1 + $0x14] sm:$0xf]
    %v26 = vld [vmem:[%s1 + $0x18] sm:$0xf]
    %v27 = vld [vmem:[%s1 + $0x1c] sm:$0xf]
    %v28 = vld [vmem:[%s1 + $0x20] sm:$0xf]
    %v29 = vld [vmem:[%s1 + $0x24] sm:$0xf]
    %v30 = vld [vmem:[%s1 + $0x28] sm:$0xf]
    %v31 = vld [vmem:[%s1 + $0x2c] sm:$0xf]
    %v32 = vld [vmem:[%s1 + $0x30] sm:$0xf]
    %v33 = vld [vmem:[%s1 + $0x34] sm:$0xf]
    %v34 = vld [vmem:[%s1 + $0x38] sm:$0xf]
    %v35 = vld [vmem:[%s1 + $0x3c] sm:$0xf]
    %v36 = vld [vmem:[%s1 + $0x40] sm:$0xf]
    %v37 = vld [vmem:[%s1 + $0x44] sm:$0xf]
    %v38 = vld [vmem:[%s1 + $0x48] sm:$0xf]
    %v39 = vld [vmem:[%s1 + $0x4c] sm:$0xf]
    %v40 = vld [vmem:[%s1 + $0x50] sm:$0xf]
    %v41 = vld [vmem:[%s1 + $0x54] sm:$0xf]
    %v42 = vld [vmem:[%s1 + $0x58] sm:$0xf]
    %v43 = vld [vmem:[%s1 + $0x5c] sm:$0xf]
    %v44 = vld [vmem:[%s1 + $0x60] sm:$0xf]
    %v45 = vld [vmem:[%s1 + $0x64] sm:$0xf]
    %v46 = vld [vmem:[%s1 + $0x68] sm:$0xf]
    %v47 = vld [vmem:[%s1 + $0x6c] sm:$0xf]
    %v48 = vld [vmem:[%s1 + $0x70] sm:$0xf]
    %v49 = vld [vmem:[%s1 + $0x74] sm:$0xf]
    %v50 = vld [vmem:[%s1 + $0x78] sm:$0xf]
    %v51 = vld [vmem:[%s1 + $0x7c] sm:$0xf]
    %v52 = vld [vmem:[%s1 + $0x80] sm:$0xf]
    %v53 = vld [vmem:[%s1 + $0x84] sm:$0xf]
    %v54 = vld [vmem:[%s1 + $0x88] sm:$0xf]
    %v55 = vld [vmem:[%s1 + $0x8c] sm:$0xf]
    %v56 = vld [vmem:[%s1 + $0x90] sm:$0xf]
    %v57 = vld [vmem:[%s1 + $0x94] sm:$0xf]
    %v58 = vld [vmem:[%s1 + $0x98] sm:$0xf]
    %v59 = vld [vmem:[%s1 + $0x9c] sm:$0xf]
    %v60 = vld [vmem:[%s1 + $0xa0] sm:$0xf]
    %v61 = vld [vmem:[%s1 + $0xa4] sm:$0xf]
    %v62 = vld [vmem:[%s1 + $0xa8] sm:$0xf]
    %v63 = vld [vmem:[%s1 + $0xac] sm:$0xf]
    %v64 = vld [vmem:[%s1 + $0xb0] sm:$0xf]
    %v65 = vld [vmem:[%s1 + $0xb4] sm:$0xf]
    %v66 = vld [vmem:[%s1 + $0xb8] sm:$0xf]
    %v67 = vld [vmem:[%s1 + $0xbc] sm:$0xf]
    %v68 = vld [vmem:[%s1 + $0xc0] sm:$0xf]
    %v69 = vld [vmem:[%s1 + $0xc4] sm:$0xf]
    %v70 = vld [vmem:[%s1 + $0xc8] sm:$0xf]
    %v71 = vld [vmem:[%s1 + $0xcc] sm:$0xf]
    %v72 = vld [vmem:[%s1 + $0xd0] sm:$0xf]
    %v73 = vld [vmem:[%s1 + $0xd4] sm:$0xf]
    %v74 = vld [vmem:[%s1 + $0xd8] sm:$0xf]
    %v75 = vld [vmem:[%s1 + $0xdc] sm:$0xf]
    %v76 = vld [vmem:[%s1 + $0xe0] sm:$0xf]
    %v77 = vld [vmem:[%s1 + $0xe4] sm:$0xf]
    %v78 = vld [vmem:[%s1 + $0xe8] sm:$0xf]
    %v79 = vld [vmem:[%s1 + $0xec] sm:$0xf]
    %v80 = vld [vmem:[%s1 + $0xf0] sm:$0xf]
    %v81 = vld [vmem:[%s1 + $0xf4] sm:$0xf]
    %v82 = vld [vmem:[%s1 + $0xf8] sm:$0xf]
    %v83 = vld [vmem:[%s1 + $0xfc] sm:$0xf]
    %v84 = vld [vmem:[%s1 + $0x100] sm:$0xf]
    %v85 = vld [vmem:[%s1 + $0x104] sm:$0xf]
    %v86 = vld [vmem:[%s1 + $0x108] sm:$0xf]
    %v87 = vld [vmem:[%s1 + $0x10c] sm:$0xf]
    %v88 = vld [vmem:[%s1 + $0x110] sm:$0xf]
    %v89 = vld [vmem:[%s1 + $0x114] sm:$0xf]
    %v90 = vld [vmem:[%s1 + $0x118] sm:$0xf]
    %v91 = vld [vmem:[%s1 + $0x11c] sm:$0xf]
    %v92 = vld [vmem:[%s1 + $0x120] sm:$0xf]
    %v93 = vld [vmem:[%s1 + $0x124] sm:$0xf]
    %v94 = vld [vmem:[%s1 + $0x128] sm:$0xf]
    %v95 = vld [vmem:[%s1 + $0x12c] sm:$0xf]
    %v96 = vld [vmem:[%s1 + $0x130] sm:$0xf]
    %v97 = vld [vmem:[%s1 + $0x134] sm:$0xf]
    %v98 = vld [vmem:[%s1 + $0x138] sm:$0xf]
    %v99 = vld [vmem:[%s1 + $0x13c] sm:$0xf]
    %v100 = vld [vmem:[%s1 + $0x140] sm:$0xf]
    %v101 = vld [vmem:[%s1 + $0x144] sm:$0xf]
    %v102 = vld [vmem:[%s1 + $0x148] sm:$0xf]
    %v103 = vld [vmem:[%s1 + $0x14c] sm:$0xf]
    %v104 = vld [vmem:[%s1 + $0x150] sm:$0xf]
    %v105 = vld [vmem:[%s1 + $0x154] sm:$0xf]
    %v106 = vld [vmem:[%s1 + $0x158] sm:$0xf]
    %v107 = vld [vmem:[%s1 + $0x15c] sm:$0xf]
    %v108 = vld [vmem:[%s1 + $0x160] sm:$0xf]
    %v109 = vld [vmem:[%s1 + $0x164] sm:$0xf]
    %v110 = vld [vmem:[%s1 + $0x168] sm:$0xf]
    %v111 = vld [vmem:[%s1 + $0x16c] sm:$0xf]
    %v112 = vld [vmem:[%s1 + $0x170] sm:$0xf]
    %v113 = vld [vmem:[%s1 + $0x174] sm:$0xf]
    %v114 = vld [vmem:[%s1 + $0x178] sm:$0xf]
    %v115 = vld [vmem:[%s1 + $0x17c] sm:$0xf]
    %v116 = vld [vmem:[%s1 + $0x180] sm:$0xf]
    %v117 = vld [vmem:[%s1 + $0x184] sm:$0xf]
    %v118 = vld [vmem:[%s1 + $0x188] sm:$0xf]
    %v119 = vld [vmem:[%s1 + $0x18c] sm:$0xf]
    %v120 = vld [vmem:[%s1 + $0x190] sm:$0xf]
    %v121 = vld [vmem:[%s1 + $0x194] sm:$0xf]
    %v122 = vld [vmem:[%s1 + $0x198] sm:$0xf]
    %v123 = vld [vmem:[%s1 + $0x19c] sm:$0xf]
    %v124 = vld [vmem:[%s1 + $0x1a0] sm:$0xf]
    %v125 = vld [vmem:[%s1 + $0x1a4] sm:$0xf]
    %v126 = vld [vmem:[%s1 + $0x1a8] sm:$0xf]
    %v127 = vld [vmem:[%s1 + $0x1ac] sm:$0xf]
    %v128 = vld [vmem:[%s1 + $0x1b0] sm:$0xf]
    %v129 = vld [vmem:[%s1 + $0x1b4] sm:$0xf]
    %v130 = vld [vmem:[%s1 + $0x1b8] sm:$0xf]
    %v131 = vld [vmem:[%s1 + $0x1bc] sm:$0xf]
    %v132 = vld [vmem:[%s1 + $0x1c0] sm:$0xf]
    %v133 = vld [vmem:[%s1 + $0x1c4] sm:$0xf]
    %v134 = vld [vmem:[%s1 + $0x1c8] sm:$0xf]
    %v135 = vld [vmem:[%s1 + $0x1cc] sm:$0xf]
    %v136 = vld [vmem:[%s1 + $0x1d0] sm:$0xf]
    %v137 = vld [vmem:[%s1 + $0x1d4] sm:$0xf]
    %v138 = vld [vmem:[%s1 + $0x1d8] sm:$0xf]
    %v139 = vld [vmem:[%s1 + $0x1dc] sm:$0xf]
    %v140 = vld [vmem:[%s1 + $0x1e0] sm:$0xf]
    %v141 = vld [vmem:[%s1 + $0x1e4] sm:$0xf]
    %v142 = vld [vmem:[%s1 + $0x1e8] sm:$0xf]
    %v143 = vld [vmem:[%s1 + $0x1ec] sm:$0xf]
    %v144 = vld [vmem:[%s1 + $0x1f0] sm:$0xf]
    %v145 = vld [vmem:[%s1 + $0x1f4] sm:$0xf]
    %v146 = vld [vmem:[%s1 + $0x1f8] sm:$0xf]
    %v147 = vld [vmem:[%s1 + $0x1fc] sm:$0xf]
    %v148 = vunpack.c.l.bf16 %v20
    %v149 = vunpack.c.l.bf16 %v21
    %v150 = vunpack.c.l.bf16 %v22
    %v151 = vunpack.c.l.bf16 %v23
    %v152 = vunpack.c.l.bf16 %v24
    %v153 = vunpack.c.l.bf16 %v25
    %v154 = vunpack.c.l.bf16 %v26
    %v155 = vunpack.c.l.bf16 %v27
    %v156 = vunpack.c.l.bf16 %v28
    %v157 = vunpack.c.l.bf16 %v29
    %v158 = vunpack.c.l.bf16 %v30
    %v159 = vunpack.c.l.bf16 %v31
    %v160 = vunpack.c.l.bf16 %v32
    %v161 = vunpack.c.l.bf16 %v33
    %v162 = vunpack.c.l.bf16 %v34
    %v163 = vunpack.c.l.bf16 %v35
    %v164 = vunpack.c.l.bf16 %v36
    %v165 = vunpack.c.l.bf16 %v37
    %v166 = vunpack.c.l.bf16 %v38
    %v167 = vunpack.c.l.bf16 %v39
    %v168 = vunpack.c.l.bf16 %v40
    %v169 = vunpack.c.l.bf16 %v41
    %v170 = vunpack.c.l.bf16 %v42
    %v171 = vunpack.c.l.bf16 %v43
    %v172 = vunpack.c.l.bf16 %v44
    %v173 = vunpack.c.l.bf16 %v45
    %v174 = vunpack.c.l.bf16 %v46
    %v175 = vunpack.c.l.bf16 %v47
    %v176 = vunpack.c.l.bf16 %v48
    %v177 = vunpack.c.l.bf16 %v49
    %v178 = vunpack.c.l.bf16 %v50
    %v179 = vunpack.c.l.bf16 %v51
    %v180 = vunpack.c.l.bf16 %v52
    %v181 = vunpack.c.l.bf16 %v53
    %v182 = vunpack.c.l.bf16 %v54
    %v183 = vunpack.c.l.bf16 %v55
    %v184 = vunpack.c.l.bf16 %v56
    %v185 = vunpack.c.l.bf16 %v57
    %v186 = vunpack.c.l.bf16 %v58
    %v187 = vunpack.c.l.bf16 %v59
    %v188 = vunpack.c.l.bf16 %v60
    %v189 = vunpack.c.l.bf16 %v61
    %v190 = vunpack.c.l.bf16 %v62
    %v191 = vunpack.c.l.bf16 %v63
    %v192 = vunpack.c.l.bf16 %v64
    %v193 = vunpack.c.l.bf16 %v65
    %v194 = vunpack.c.l.bf16 %v66
    %v195 = vunpack.c.l.bf16 %v67
    %v196 = vunpack.c.l.bf16 %v68
    %v197 = vunpack.c.l.bf16 %v69
    %v198 = vunpack.c.l.bf16 %v70
    %v199 = vunpack.c.l.bf16 %v71
    %v200 = vunpack.c.l.bf16 %v72
    %v201 = vunpack.c.l.bf16 %v73
    %v202 = vunpack.c.l.bf16 %v74
    %v203 = vunpack.c.l.bf16 %v75
    %v204 = vunpack.c.l.bf16 %v76
    %v205 = vunpack.c.l.bf16 %v77
    %v206 = vunpack.c.l.bf16 %v78
    %v207 = vunpack.c.l.bf16 %v79
    %v208 = vunpack.c.l.bf16 %v80
    %v209 = vunpack.c.l.bf16 %v81
    %v210 = vunpack.c.l.bf16 %v82
    %v211 = vunpack.c.l.bf16 %v83
    %v212 = vunpack.c.l.bf16 %v84
    %v213 = vunpack.c.l.bf16 %v85
    %v214 = vunpack.c.l.bf16 %v86
    %v215 = vunpack.c.l.bf16 %v87
    %v216 = vunpack.c.l.bf16 %v88
    %v217 = vunpack.c.l.bf16 %v89
    %v218 = vunpack.c.l.bf16 %v90
    %v219 = vunpack.c.l.bf16 %v91
    %v220 = vunpack.c.l.bf16 %v92
    %v221 = vunpack.c.l.bf16 %v93
    %v222 = vunpack.c.l.bf16 %v94
    %v223 = vunpack.c.l.bf16 %v95
    %v224 = vunpack.c.l.bf16 %v96
    %v225 = vunpack.c.l.bf16 %v97
    %v226 = vunpack.c.l.bf16 %v98
    %v227 = vunpack.c.l.bf16 %v99
    %v228 = vunpack.c.l.bf16 %v100
    %v229 = vunpack.c.l.bf16 %v101
    %v230 = vunpack.c.l.bf16 %v102
    %v231 = vunpack.c.l.bf16 %v103
    %v232 = vunpack.c.l.bf16 %v104
    %v233 = vunpack.c.l.bf16 %v105
    %v234 = vunpack.c.l.bf16 %v106
    %v235 = vunpack.c.l.bf16 %v107
    %v236 = vunpack.c.l.bf16 %v108
    %v237 = vunpack.c.l.bf16 %v109
    %v238 = vunpack.c.l.bf16 %v110
    %v239 = vunpack.c.l.bf16 %v111
    %v240 = vunpack.c.l.bf16 %v112
    %v241 = vunpack.c.l.bf16 %v113
    %v242 = vunpack.c.l.bf16 %v114
    %v243 = vunpack.c.l.bf16 %v115
    %v244 = vunpack.c.l.bf16 %v116
    %v245 = vunpack.c.l.bf16 %v117
    %v246 = vunpack.c.l.bf16 %v118
    %v247 = vunpack.c.l.bf16 %v119
    %v248 = vunpack.c.l.bf16 %v120
    %v249 = vunpack.c.l.bf16 %v121
    %v250 = vunpack.c.l.bf16 %v122
    %v251 = vunpack.c.l.bf16 %v123
    %v252 = vunpack.c.l.bf16 %v124
    %v253 = vunpack.c.l.bf16 %v125
    %v254 = vunpack.c.l.bf16 %v126
    %v255 = vunpack.c.l.bf16 %v127
    %v256 = vunpack.c.l.bf16 %v128
    %v257 = vunpack.c.l.bf16 %v129
    %v258 = vunpack.c.l.bf16 %v130
    %v259 = vunpack.c.l.bf16 %v131
    %v260 = vunpack.c.l.bf16 %v132
    %v261 = vunpack.c.l.bf16 %v133
    %v262 = vunpack.c.l.bf16 %v134
    %v263 = vunpack.c.l.bf16 %v135
    %v264 = vunpack.c.l.bf16 %v136
    %v265 = vunpack.c.l.bf16 %v137
    %v266 = vunpack.c.l.bf16 %v138
    %v267 = vunpack.c.l.bf16 %v139
    %v268 = vunpack.c.l.bf16 %v140
    %v269 = vunpack.c.l.bf16 %v141
    %v270 = vunpack.c.l.bf16 %v142
    %v271 = vunpack.c.l.bf16 %v143
    %v272 = vunpack.c.l.bf16 %v144
    %v273 = vunpack.c.l.bf16 %v145
    %v274 = vunpack.c.l.bf16 %v146
    %v275 = vunpack.c.l.bf16 %v147
    %v284 = vperm.slane %v12, 0
    %v285 = vperm.slane %v13, 0
    %v286 = vperm.slane %v14, 0
    %v287 = vperm.slane %v15, 0
    %v288 = vperm.slane %v16, 0
    %v289 = vperm.slane %v17, 0
    %v290 = vperm.slane %v18, 0
    %v291 = vperm.slane %v19, 0
    %v300 = vmul.f32 %v148, %v284
    %v301 = vmul.f32 %v149, %v284
    %v302 = vmul.f32 %v150, %v284
    %v303 = vmul.f32 %v151, %v284
    %v304 = vmul.f32 %v152, %v284
    %v305 = vmul.f32 %v153, %v284
    %v306 = vmul.f32 %v154, %v284
    %v307 = vmul.f32 %v155, %v284
    %v308 = vmul.f32 %v156, %v284
    %v309 = vmul.f32 %v157, %v284
    %v310 = vmul.f32 %v158, %v284
    %v311 = vmul.f32 %v159, %v284
    %v312 = vmul.f32 %v160, %v284
    %v313 = vmul.f32 %v161, %v284
    %v314 = vmul.f32 %v162, %v284
    %v315 = vmul.f32 %v163, %v284
    %v316 = vmul.f32 %v164, %v285
    %v317 = vmul.f32 %v165, %v285
    %v318 = vmul.f32 %v166, %v285
    %v319 = vmul.f32 %v167, %v285
    %v320 = vmul.f32 %v168, %v285
    %v321 = vmul.f32 %v169, %v285
    %v322 = vmul.f32 %v170, %v285
    %v323 = vmul.f32 %v171, %v285
    %v324 = vmul.f32 %v172, %v285
    %v325 = vmul.f32 %v173, %v285
    %v326 = vmul.f32 %v174, %v285
    %v327 = vmul.f32 %v175, %v285
    %v328 = vmul.f32 %v176, %v285
    %v329 = vmul.f32 %v177, %v285
    %v330 = vmul.f32 %v178, %v285
    %v331 = vmul.f32 %v179, %v285
    %v332 = vmul.f32 %v180, %v286
    %v333 = vmul.f32 %v181, %v286
    %v334 = vmul.f32 %v182, %v286
    %v335 = vmul.f32 %v183, %v286
    %v336 = vmul.f32 %v184, %v286
    %v337 = vmul.f32 %v185, %v286
    %v338 = vmul.f32 %v186, %v286
    %v339 = vmul.f32 %v187, %v286
    %v340 = vmul.f32 %v188, %v286
    %v341 = vmul.f32 %v189, %v286
    %v342 = vmul.f32 %v190, %v286
    %v343 = vmul.f32 %v191, %v286
    %v344 = vmul.f32 %v192, %v286
    %v345 = vmul.f32 %v193, %v286
    %v346 = vmul.f32 %v194, %v286
    %v347 = vmul.f32 %v195, %v286
    %v348 = vmul.f32 %v196, %v287
    %v349 = vmul.f32 %v197, %v287
    %v350 = vmul.f32 %v198, %v287
    %v351 = vmul.f32 %v199, %v287
    %v352 = vmul.f32 %v200, %v287
    %v353 = vmul.f32 %v201, %v287
    %v354 = vmul.f32 %v202, %v287
    %v355 = vmul.f32 %v203, %v287
    %v356 = vmul.f32 %v204, %v287
    %v357 = vmul.f32 %v205, %v287
    %v358 = vmul.f32 %v206, %v287
    %v359 = vmul.f32 %v207, %v287
    %v360 = vmul.f32 %v208, %v287
    %v361 = vmul.f32 %v209, %v287
    %v362 = vmul.f32 %v210, %v287
    %v363 = vmul.f32 %v211, %v287
    %v364 = vmul.f32 %v212, %v288
    %v365 = vmul.f32 %v213, %v288
    %v366 = vmul.f32 %v214, %v288
    %v367 = vmul.f32 %v215, %v288
    %v368 = vmul.f32 %v216, %v288
    %v369 = vmul.f32 %v217, %v288
    %v370 = vmul.f32 %v218, %v288
    %v371 = vmul.f32 %v219, %v288
    %v372 = vmul.f32 %v220, %v288
    %v373 = vmul.f32 %v221, %v288
    %v374 = vmul.f32 %v222, %v288
    %v375 = vmul.f32 %v223, %v288
    %v376 = vmul.f32 %v224, %v288
    %v377 = vmul.f32 %v225, %v288
    %v378 = vmul.f32 %v226, %v288
    %v379 = vmul.f32 %v227, %v288
    %v380 = vmul.f32 %v228, %v289
    %v381 = vmul.f32 %v229, %v289
    %v382 = vmul.f32 %v230, %v289
    %v383 = vmul.f32 %v231, %v289
    %v384 = vmul.f32 %v232, %v289
    %v385 = vmul.f32 %v233, %v289
    %v386 = vmul.f32 %v234, %v289
    %v387 = vmul.f32 %v235, %v289
    %v388 = vmul.f32 %v236, %v289
    %v389 = vmul.f32 %v237, %v289
    %v390 = vmul.f32 %v238, %v289
    %v391 = vmul.f32 %v239, %v289
    %v392 = vmul.f32 %v240, %v289
    %v393 = vmul.f32 %v241, %v289
    %v394 = vmul.f32 %v242, %v289
    %v395 = vmul.f32 %v243, %v289
    %v396 = vmul.f32 %v244, %v290
    %v397 = vmul.f32 %v245, %v290
    %v398 = vmul.f32 %v246, %v290
    %v399 = vmul.f32 %v247, %v290
    %v400 = vmul.f32 %v248, %v290
    %v401 = vmul.f32 %v249, %v290
    %v402 = vmul.f32 %v250, %v290
    %v403 = vmul.f32 %v251, %v290
    %v404 = vmul.f32 %v252, %v290
    %v405 = vmul.f32 %v253, %v290
    %v406 = vmul.f32 %v254, %v290
    %v407 = vmul.f32 %v255, %v290
    %v408 = vmul.f32 %v256, %v290
    %v409 = vmul.f32 %v257, %v290
    %v410 = vmul.f32 %v258, %v290
    %v411 = vmul.f32 %v259, %v290
    %v412 = vmul.f32 %v260, %v291
    %v413 = vmul.f32 %v261, %v291
    %v414 = vmul.f32 %v262, %v291
    %v415 = vmul.f32 %v263, %v291
    %v416 = vmul.f32 %v264, %v291
    %v417 = vmul.f32 %v265, %v291
    %v418 = vmul.f32 %v266, %v291
    %v419 = vmul.f32 %v267, %v291
    %v420 = vmul.f32 %v268, %v291
    %v421 = vmul.f32 %v269, %v291
    %v422 = vmul.f32 %v270, %v291
    %v423 = vmul.f32 %v271, %v291
    %v424 = vmul.f32 %v272, %v291
    %v425 = vmul.f32 %v273, %v291
    %v426 = vmul.f32 %v274, %v291
    %v427 = vmul.f32 %v275, %v291
    %vm428 = vcmask 261120
    %v429 = vsel %vm428, %v300, 0.0
    %430 = vadd.xlane.f32.xlu0 %v429
    %v431 = vpop.xlane.xlu0 %430
    %v432 = vsel %vm428, %v301, 0.0
    %433 = vadd.xlane.f32.xlu0 %v432
    %v434 = vpop.xlane.xlu0 %433
    %v435 = vsel %vm428, %v302, 0.0
    %436 = vadd.xlane.f32.xlu0 %v435
    %v437 = vpop.xlane.xlu0 %436
    %v438 = vsel %vm428, %v303, 0.0
    %439 = vadd.xlane.f32.xlu0 %v438
    %v440 = vpop.xlane.xlu0 %439
    %v441 = vsel %vm428, %v304, 0.0
    %442 = vadd.xlane.f32.xlu0 %v441
    %v443 = vpop.xlane.xlu0 %442
    %v444 = vsel %vm428, %v305, 0.0
    %445 = vadd.xlane.f32.xlu0 %v444
    %v446 = vpop.xlane.xlu0 %445
    %v447 = vsel %vm428, %v306, 0.0
    %448 = vadd.xlane.f32.xlu0 %v447
    %v449 = vpop.xlane.xlu0 %448
    %v450 = vsel %vm428, %v307, 0.0
    %451 = vadd.xlane.f32.xlu0 %v450
    %v452 = vpop.xlane.xlu0 %451
    %v453 = vsel %vm428, %v308, 0.0
    %454 = vadd.xlane.f32.xlu0 %v453
    %v455 = vpop.xlane.xlu0 %454
    %v456 = vsel %vm428, %v309, 0.0
    %457 = vadd.xlane.f32.xlu0 %v456
    %v458 = vpop.xlane.xlu0 %457
    %v459 = vsel %vm428, %v310, 0.0
    %460 = vadd.xlane.f32.xlu0 %v459
    %v461 = vpop.xlane.xlu0 %460
    %v462 = vsel %vm428, %v311, 0.0
    %463 = vadd.xlane.f32.xlu0 %v462
    %v464 = vpop.xlane.xlu0 %463
    %v465 = vsel %vm428, %v312, 0.0
    %466 = vadd.xlane.f32.xlu0 %v465
    %v467 = vpop.xlane.xlu0 %466
    %v468 = vsel %vm428, %v313, 0.0
    %469 = vadd.xlane.f32.xlu0 %v468
    %v470 = vpop.xlane.xlu0 %469
    %v471 = vsel %vm428, %v314, 0.0
    %472 = vadd.xlane.f32.xlu0 %v471
    %v473 = vpop.xlane.xlu0 %472
    %v474 = vsel %vm428, %v315, 0.0
    %475 = vadd.xlane.f32.xlu0 %v474
    %v476 = vpop.xlane.xlu0 %475
    %v477 = vsel %vm428, %v316, 0.0
    %478 = vadd.xlane.f32.xlu0 %v477
    %v479 = vpop.xlane.xlu0 %478
    %v480 = vsel %vm428, %v317, 0.0
    %481 = vadd.xlane.f32.xlu0 %v480
    %v482 = vpop.xlane.xlu0 %481
    %v483 = vsel %vm428, %v318, 0.0
    %484 = vadd.xlane.f32.xlu0 %v483
    %v485 = vpop.xlane.xlu0 %484
    %v486 = vsel %vm428, %v319, 0.0
    %487 = vadd.xlane.f32.xlu0 %v486
    %v488 = vpop.xlane.xlu0 %487
    %v489 = vsel %vm428, %v320, 0.0
    %490 = vadd.xlane.f32.xlu0 %v489
    %v491 = vpop.xlane.xlu0 %490
    %v492 = vsel %vm428, %v321, 0.0
    %493 = vadd.xlane.f32.xlu0 %v492
    %v494 = vpop.xlane.xlu0 %493
    %v495 = vsel %vm428, %v322, 0.0
    %496 = vadd.xlane.f32.xlu0 %v495
    %v497 = vpop.xlane.xlu0 %496
    %v498 = vsel %vm428, %v323, 0.0
    %499 = vadd.xlane.f32.xlu0 %v498
    %v500 = vpop.xlane.xlu0 %499
    %v501 = vsel %vm428, %v324, 0.0
    %502 = vadd.xlane.f32.xlu0 %v501
    %v503 = vpop.xlane.xlu0 %502
    %v504 = vsel %vm428, %v325, 0.0
    %505 = vadd.xlane.f32.xlu0 %v504
    %v506 = vpop.xlane.xlu0 %505
    %v507 = vsel %vm428, %v326, 0.0
    %508 = vadd.xlane.f32.xlu0 %v507
    %v509 = vpop.xlane.xlu0 %508
    %v510 = vsel %vm428, %v327, 0.0
    %511 = vadd.xlane.f32.xlu0 %v510
    %v512 = vpop.xlane.xlu0 %511
    %v513 = vsel %vm428, %v328, 0.0
    %514 = vadd.xlane.f32.xlu0 %v513
    %v515 = vpop.xlane.xlu0 %514
    %v516 = vsel %vm428, %v329, 0.0
    %517 = vadd.xlane.f32.xlu0 %v516
    %v518 = vpop.xlane.xlu0 %517
    %v519 = vsel %vm428, %v330, 0.0
    %520 = vadd.xlane.f32.xlu0 %v519
    %v521 = vpop.xlane.xlu0 %520
    %v522 = vsel %vm428, %v331, 0.0
    %523 = vadd.xlane.f32.xlu0 %v522
    %v524 = vpop.xlane.xlu0 %523
    %v525 = vsel %vm428, %v332, 0.0
    %526 = vadd.xlane.f32.xlu0 %v525
    %v527 = vpop.xlane.xlu0 %526
    %v528 = vsel %vm428, %v333, 0.0
    %529 = vadd.xlane.f32.xlu0 %v528
    %v530 = vpop.xlane.xlu0 %529
    %v531 = vsel %vm428, %v334, 0.0
    %532 = vadd.xlane.f32.xlu0 %v531
    %v533 = vpop.xlane.xlu0 %532
    %v534 = vsel %vm428, %v335, 0.0
    %535 = vadd.xlane.f32.xlu0 %v534
    %v536 = vpop.xlane.xlu0 %535
    %v537 = vsel %vm428, %v336, 0.0
    %538 = vadd.xlane.f32.xlu0 %v537
    %v539 = vpop.xlane.xlu0 %538
    %v540 = vsel %vm428, %v337, 0.0
    %541 = vadd.xlane.f32.xlu0 %v540
    %v542 = vpop.xlane.xlu0 %541
    %v543 = vsel %vm428, %v338, 0.0
    %544 = vadd.xlane.f32.xlu0 %v543
    %v545 = vpop.xlane.xlu0 %544
    %v546 = vsel %vm428, %v339, 0.0
    %547 = vadd.xlane.f32.xlu0 %v546
    %v548 = vpop.xlane.xlu0 %547
    %v549 = vsel %vm428, %v340, 0.0
    %550 = vadd.xlane.f32.xlu0 %v549
    %v551 = vpop.xlane.xlu0 %550
    %v552 = vsel %vm428, %v341, 0.0
    %553 = vadd.xlane.f32.xlu0 %v552
    %v554 = vpop.xlane.xlu0 %553
    %v555 = vsel %vm428, %v342, 0.0
    %556 = vadd.xlane.f32.xlu0 %v555
    %v557 = vpop.xlane.xlu0 %556
    %v558 = vsel %vm428, %v343, 0.0
    %559 = vadd.xlane.f32.xlu0 %v558
    %v560 = vpop.xlane.xlu0 %559
    %v561 = vsel %vm428, %v344, 0.0
    %562 = vadd.xlane.f32.xlu0 %v561
    %v563 = vpop.xlane.xlu0 %562
    %v564 = vsel %vm428, %v345, 0.0
    %565 = vadd.xlane.f32.xlu0 %v564
    %v566 = vpop.xlane.xlu0 %565
    %v567 = vsel %vm428, %v346, 0.0
    %568 = vadd.xlane.f32.xlu0 %v567
    %v569 = vpop.xlane.xlu0 %568
    %v570 = vsel %vm428, %v347, 0.0
    %571 = vadd.xlane.f32.xlu0 %v570
    %v572 = vpop.xlane.xlu0 %571
    %v573 = vsel %vm428, %v348, 0.0
    %574 = vadd.xlane.f32.xlu0 %v573
    %v575 = vpop.xlane.xlu0 %574
    %v576 = vsel %vm428, %v349, 0.0
    %577 = vadd.xlane.f32.xlu0 %v576
    %v578 = vpop.xlane.xlu0 %577
    %v579 = vsel %vm428, %v350, 0.0
    %580 = vadd.xlane.f32.xlu0 %v579
    %v581 = vpop.xlane.xlu0 %580
    %v582 = vsel %vm428, %v351, 0.0
    %583 = vadd.xlane.f32.xlu0 %v582
    %v584 = vpop.xlane.xlu0 %583
    %v585 = vsel %vm428, %v352, 0.0
    %586 = vadd.xlane.f32.xlu0 %v585
    %v587 = vpop.xlane.xlu0 %586
    %v588 = vsel %vm428, %v353, 0.0
    %589 = vadd.xlane.f32.xlu0 %v588
    %v590 = vpop.xlane.xlu0 %589
    %v591 = vsel %vm428, %v354, 0.0
    %592 = vadd.xlane.f32.xlu0 %v591
    %v593 = vpop.xlane.xlu0 %592
    %v594 = vsel %vm428, %v355, 0.0
    %595 = vadd.xlane.f32.xlu0 %v594
    %v596 = vpop.xlane.xlu0 %595
    %v597 = vsel %vm428, %v356, 0.0
    %598 = vadd.xlane.f32.xlu0 %v597
    %v599 = vpop.xlane.xlu0 %598
    %v600 = vsel %vm428, %v357, 0.0
    %601 = vadd.xlane.f32.xlu0 %v600
    %v602 = vpop.xlane.xlu0 %601
    %v603 = vsel %vm428, %v358, 0.0
    %604 = vadd.xlane.f32.xlu0 %v603
    %v605 = vpop.xlane.xlu0 %604
    %v606 = vsel %vm428, %v359, 0.0
    %607 = vadd.xlane.f32.xlu0 %v606
    %v608 = vpop.xlane.xlu0 %607
    %v609 = vsel %vm428, %v360, 0.0
    %610 = vadd.xlane.f32.xlu0 %v609
    %v611 = vpop.xlane.xlu0 %610
    %v612 = vsel %vm428, %v361, 0.0
    %613 = vadd.xlane.f32.xlu0 %v612
    %v614 = vpop.xlane.xlu0 %613
    %v615 = vsel %vm428, %v362, 0.0
    %616 = vadd.xlane.f32.xlu0 %v615
    %v617 = vpop.xlane.xlu0 %616
    %v618 = vsel %vm428, %v363, 0.0
    %619 = vadd.xlane.f32.xlu0 %v618
    %v620 = vpop.xlane.xlu0 %619
    %v621 = vsel %vm428, %v364, 0.0
    %622 = vadd.xlane.f32.xlu0 %v621
    %v623 = vpop.xlane.xlu0 %622
    %v624 = vsel %vm428, %v365, 0.0
    %625 = vadd.xlane.f32.xlu0 %v624
    %v626 = vpop.xlane.xlu0 %625
    %v627 = vsel %vm428, %v366, 0.0
    %628 = vadd.xlane.f32.xlu0 %v627
    %v629 = vpop.xlane.xlu0 %628
    %v630 = vsel %vm428, %v367, 0.0
    %631 = vadd.xlane.f32.xlu0 %v630
    %v632 = vpop.xlane.xlu0 %631
    %v633 = vsel %vm428, %v368, 0.0
    %634 = vadd.xlane.f32.xlu0 %v633
    %v635 = vpop.xlane.xlu0 %634
    %v636 = vsel %vm428, %v369, 0.0
    %637 = vadd.xlane.f32.xlu0 %v636
    %v638 = vpop.xlane.xlu0 %637
    %v639 = vsel %vm428, %v370, 0.0
    %640 = vadd.xlane.f32.xlu0 %v639
    %v641 = vpop.xlane.xlu0 %640
    %v642 = vsel %vm428, %v371, 0.0
    %643 = vadd.xlane.f32.xlu0 %v642
    %v644 = vpop.xlane.xlu0 %643
    %v645 = vsel %vm428, %v372, 0.0
    %646 = vadd.xlane.f32.xlu0 %v645
    %v647 = vpop.xlane.xlu0 %646
    %v648 = vsel %vm428, %v373, 0.0
    %649 = vadd.xlane.f32.xlu0 %v648
    %v650 = vpop.xlane.xlu0 %649
    %v651 = vsel %vm428, %v374, 0.0
    %652 = vadd.xlane.f32.xlu0 %v651
    %v653 = vpop.xlane.xlu0 %652
    %v654 = vsel %vm428, %v375, 0.0
    %655 = vadd.xlane.f32.xlu0 %v654
    %v656 = vpop.xlane.xlu0 %655
    %v657 = vsel %vm428, %v376, 0.0
    %658 = vadd.xlane.f32.xlu0 %v657
    %v659 = vpop.xlane.xlu0 %658
    %v660 = vsel %vm428, %v377, 0.0
    %661 = vadd.xlane.f32.xlu0 %v660
    %v662 = vpop.xlane.xlu0 %661
    %v663 = vsel %vm428, %v378, 0.0
    %664 = vadd.xlane.f32.xlu0 %v663
    %v665 = vpop.xlane.xlu0 %664
    %v666 = vsel %vm428, %v379, 0.0
    %667 = vadd.xlane.f32.xlu0 %v666
    %v668 = vpop.xlane.xlu0 %667
    %v669 = vsel %vm428, %v380, 0.0
    %670 = vadd.xlane.f32.xlu0 %v669
    %v671 = vpop.xlane.xlu0 %670
    %v672 = vsel %vm428, %v381, 0.0
    %673 = vadd.xlane.f32.xlu0 %v672
    %v674 = vpop.xlane.xlu0 %673
    %v675 = vsel %vm428, %v382, 0.0
    %676 = vadd.xlane.f32.xlu0 %v675
    %v677 = vpop.xlane.xlu0 %676
    %v678 = vsel %vm428, %v383, 0.0
    %679 = vadd.xlane.f32.xlu0 %v678
    %v680 = vpop.xlane.xlu0 %679
    %v681 = vsel %vm428, %v384, 0.0
    %682 = vadd.xlane.f32.xlu0 %v681
    %v683 = vpop.xlane.xlu0 %682
    %v684 = vsel %vm428, %v385, 0.0
    %685 = vadd.xlane.f32.xlu0 %v684
    %v686 = vpop.xlane.xlu0 %685
    %v687 = vsel %vm428, %v386, 0.0
    %688 = vadd.xlane.f32.xlu0 %v687
    %v689 = vpop.xlane.xlu0 %688
    %v690 = vsel %vm428, %v387, 0.0
    %691 = vadd.xlane.f32.xlu0 %v690
    %v692 = vpop.xlane.xlu0 %691
    %v693 = vsel %vm428, %v388, 0.0
    %694 = vadd.xlane.f32.xlu0 %v693
    %v695 = vpop.xlane.xlu0 %694
    %v696 = vsel %vm428, %v389, 0.0
    %697 = vadd.xlane.f32.xlu0 %v696
    %v698 = vpop.xlane.xlu0 %697
    %v699 = vsel %vm428, %v390, 0.0
    %700 = vadd.xlane.f32.xlu0 %v699
    %v701 = vpop.xlane.xlu0 %700
    %v702 = vsel %vm428, %v391, 0.0
    %703 = vadd.xlane.f32.xlu0 %v702
    %v704 = vpop.xlane.xlu0 %703
    %v705 = vsel %vm428, %v392, 0.0
    %706 = vadd.xlane.f32.xlu0 %v705
    %v707 = vpop.xlane.xlu0 %706
    %v708 = vsel %vm428, %v393, 0.0
    %709 = vadd.xlane.f32.xlu0 %v708
    %v710 = vpop.xlane.xlu0 %709
    %v711 = vsel %vm428, %v394, 0.0
    %712 = vadd.xlane.f32.xlu0 %v711
    %v713 = vpop.xlane.xlu0 %712
    %v714 = vsel %vm428, %v395, 0.0
    %715 = vadd.xlane.f32.xlu0 %v714
    %v716 = vpop.xlane.xlu0 %715
    %v717 = vsel %vm428, %v396, 0.0
    %718 = vadd.xlane.f32.xlu0 %v717
    %v719 = vpop.xlane.xlu0 %718
    %v720 = vsel %vm428, %v397, 0.0
    %721 = vadd.xlane.f32.xlu0 %v720
    %v722 = vpop.xlane.xlu0 %721
    %v723 = vsel %vm428, %v398, 0.0
    %724 = vadd.xlane.f32.xlu0 %v723
    %v725 = vpop.xlane.xlu0 %724
    %v726 = vsel %vm428, %v399, 0.0
    %727 = vadd.xlane.f32.xlu0 %v726
    %v728 = vpop.xlane.xlu0 %727
    %v729 = vsel %vm428, %v400, 0.0
    %730 = vadd.xlane.f32.xlu0 %v729
    %v731 = vpop.xlane.xlu0 %730
    %v732 = vsel %vm428, %v401, 0.0
    %733 = vadd.xlane.f32.xlu0 %v732
    %v734 = vpop.xlane.xlu0 %733
    %v735 = vsel %vm428, %v402, 0.0
    %736 = vadd.xlane.f32.xlu0 %v735
    %v737 = vpop.xlane.xlu0 %736
    %v738 = vsel %vm428, %v403, 0.0
    %739 = vadd.xlane.f32.xlu0 %v738
    %v740 = vpop.xlane.xlu0 %739
    %v741 = vsel %vm428, %v404, 0.0
    %742 = vadd.xlane.f32.xlu0 %v741
    %v743 = vpop.xlane.xlu0 %742
    %v744 = vsel %vm428, %v405, 0.0
    %745 = vadd.xlane.f32.xlu0 %v744
    %v746 = vpop.xlane.xlu0 %745
    %v747 = vsel %vm428, %v406, 0.0
    %748 = vadd.xlane.f32.xlu0 %v747
    %v749 = vpop.xlane.xlu0 %748
    %v750 = vsel %vm428, %v407, 0.0
    %751 = vadd.xlane.f32.xlu0 %v750
    %v752 = vpop.xlane.xlu0 %751
    %v753 = vsel %vm428, %v408, 0.0
    %754 = vadd.xlane.f32.xlu0 %v753
    %v755 = vpop.xlane.xlu0 %754
    %v756 = vsel %vm428, %v409, 0.0
    %757 = vadd.xlane.f32.xlu0 %v756
    %v758 = vpop.xlane.xlu0 %757
    %v759 = vsel %vm428, %v410, 0.0
    %760 = vadd.xlane.f32.xlu0 %v759
    %v761 = vpop.xlane.xlu0 %760
    %v762 = vsel %vm428, %v411, 0.0
    %763 = vadd.xlane.f32.xlu0 %v762
    %v764 = vpop.xlane.xlu0 %763
    %v765 = vsel %vm428, %v412, 0.0
    %766 = vadd.xlane.f32.xlu0 %v765
    %v767 = vpop.xlane.xlu0 %766
    %v768 = vsel %vm428, %v413, 0.0
    %769 = vadd.xlane.f32.xlu0 %v768
    %v770 = vpop.xlane.xlu0 %769
    %v771 = vsel %vm428, %v414, 0.0
    %772 = vadd.xlane.f32.xlu0 %v771
    %v773 = vpop.xlane.xlu0 %772
    %v774 = vsel %vm428, %v415, 0.0
    %775 = vadd.xlane.f32.xlu0 %v774
    %v776 = vpop.xlane.xlu0 %775
    %v777 = vsel %vm428, %v416, 0.0
    %778 = vadd.xlane.f32.xlu0 %v777
    %v779 = vpop.xlane.xlu0 %778
    %v780 = vsel %vm428, %v417, 0.0
    %781 = vadd.xlane.f32.xlu0 %v780
    %v782 = vpop.xlane.xlu0 %781
    %v783 = vsel %vm428, %v418, 0.0
    %784 = vadd.xlane.f32.xlu0 %v783
    %v785 = vpop.xlane.xlu0 %784
    %v786 = vsel %vm428, %v419, 0.0
    %787 = vadd.xlane.f32.xlu0 %v786
    %v788 = vpop.xlane.xlu0 %787
    %v789 = vsel %vm428, %v420, 0.0
    %790 = vadd.xlane.f32.xlu0 %v789
    %v791 = vpop.xlane.xlu0 %790
    %v792 = vsel %vm428, %v421, 0.0
    %793 = vadd.xlane.f32.xlu0 %v792
    %v794 = vpop.xlane.xlu0 %793
    %v795 = vsel %vm428, %v422, 0.0
    %796 = vadd.xlane.f32.xlu0 %v795
    %v797 = vpop.xlane.xlu0 %796
    %v798 = vsel %vm428, %v423, 0.0
    %799 = vadd.xlane.f32.xlu0 %v798
    %v800 = vpop.xlane.xlu0 %799
    %v801 = vsel %vm428, %v424, 0.0
    %802 = vadd.xlane.f32.xlu0 %v801
    %v803 = vpop.xlane.xlu0 %802
    %v804 = vsel %vm428, %v425, 0.0
    %805 = vadd.xlane.f32.xlu0 %v804
    %v806 = vpop.xlane.xlu0 %805
    %v807 = vsel %vm428, %v426, 0.0
    %808 = vadd.xlane.f32.xlu0 %v807
    %v809 = vpop.xlane.xlu0 %808
    %v810 = vsel %vm428, %v427, 0.0
    %811 = vadd.xlane.f32.xlu0 %v810
    %v812 = vpop.xlane.xlu0 %811
    %v941 = vlaneseq
    %v942 = vand.u32 %v941, 127
    %v943 = vperm.slane %v431, %v942
    %v944 = vadd.s32 %v942, 4294967288
    %v945 = vperm.slane %v434, %v944
    %vm946 = vcmask 130112
    %v947 = vsel %vm946, %v945, %v943
    %v948 = vadd.s32 %v942, 4294967280
    %v949 = vperm.slane %v437, %v948
    %vm950 = vcmask 195712
    %v951 = vsel %vm950, %v949, %v947
    %v952 = vadd.s32 %v942, 4294967272
    %v953 = vperm.slane %v440, %v952
    %vm954 = vcmask 261312
    %v955 = vsel %vm954, %v953, %v951
    %v956 = vadd.s32 %v942, 4294967264
    %v957 = vperm.slane %v443, %v956
    %vm958 = vcmask 326912
    %v959 = vsel %vm958, %v957, %v955
    %v960 = vadd.s32 %v942, 4294967256
    %v961 = vperm.slane %v446, %v960
    %vm962 = vcmask 392512
    %v963 = vsel %vm962, %v961, %v959
    %v964 = vadd.s32 %v942, 4294967248
    %v965 = vperm.slane %v449, %v964
    %vm966 = vcmask 458112
    %v967 = vsel %vm966, %v965, %v963
    %v968 = vadd.s32 %v942, 4294967240
    %v969 = vperm.slane %v452, %v968
    %vm970 = vcmask 523712
    %v971 = vsel %vm970, %v969, %v967
    %v972 = vadd.s32 %v942, 4294967232
    %v973 = vperm.slane %v455, %v972
    %vm974 = vcmask 589312
    %v975 = vsel %vm974, %v973, %v971
    %v976 = vadd.s32 %v942, 4294967224
    %v977 = vperm.slane %v458, %v976
    %vm978 = vcmask 654912
    %v979 = vsel %vm978, %v977, %v975
    %v980 = vadd.s32 %v942, 4294967216
    %v981 = vperm.slane %v461, %v980
    %vm982 = vcmask 720512
    %v983 = vsel %vm982, %v981, %v979
    %v984 = vadd.s32 %v942, 4294967208
    %v985 = vperm.slane %v464, %v984
    %vm986 = vcmask 786112
    %v987 = vsel %vm986, %v985, %v983
    %v988 = vadd.s32 %v942, 4294967200
    %v989 = vperm.slane %v467, %v988
    %vm990 = vcmask 851712
    %v991 = vsel %vm990, %v989, %v987
    %v992 = vadd.s32 %v942, 4294967192
    %v993 = vperm.slane %v470, %v992
    %vm994 = vcmask 917312
    %v995 = vsel %vm994, %v993, %v991
    %v996 = vadd.s32 %v942, 4294967184
    %v997 = vperm.slane %v473, %v996
    %vm998 = vcmask 982912
    %v999 = vsel %vm998, %v997, %v995
    %v1000 = vadd.s32 %v942, 4294967176
    %v1001 = vperm.slane %v476, %v1000
    %vm1002 = vcmask 1048512
    %v1003 = vsel %vm1002, %v1001, %v999
    %v1004 = vperm.slane %v479, %v942
    %v1005 = vperm.slane %v482, %v944
    %v1006 = vsel %vm946, %v1005, %v1004
    %v1007 = vperm.slane %v485, %v948
    %v1008 = vsel %vm950, %v1007, %v1006
    %v1009 = vperm.slane %v488, %v952
    %v1010 = vsel %vm954, %v1009, %v1008
    %v1011 = vperm.slane %v491, %v956
    %v1012 = vsel %vm958, %v1011, %v1010
    %v1013 = vperm.slane %v494, %v960
    %v1014 = vsel %vm962, %v1013, %v1012
    %v1015 = vperm.slane %v497, %v964
    %v1016 = vsel %vm966, %v1015, %v1014
    %v1017 = vperm.slane %v500, %v968
    %v1018 = vsel %vm970, %v1017, %v1016
    %v1019 = vperm.slane %v503, %v972
    %v1020 = vsel %vm974, %v1019, %v1018
    %v1021 = vperm.slane %v506, %v976
    %v1022 = vsel %vm978, %v1021, %v1020
    %v1023 = vperm.slane %v509, %v980
    %v1024 = vsel %vm982, %v1023, %v1022
    %v1025 = vperm.slane %v512, %v984
    %v1026 = vsel %vm986, %v1025, %v1024
    %v1027 = vperm.slane %v515, %v988
    %v1028 = vsel %vm990, %v1027, %v1026
    %v1029 = vperm.slane %v518, %v992
    %v1030 = vsel %vm994, %v1029, %v1028
    %v1031 = vperm.slane %v521, %v996
    %v1032 = vsel %vm998, %v1031, %v1030
    %v1033 = vperm.slane %v524, %v1000
    %v1034 = vsel %vm1002, %v1033, %v1032
    %v1035 = vperm.slane %v527, %v942
    %v1036 = vperm.slane %v530, %v944
    %v1037 = vsel %vm946, %v1036, %v1035
    %v1038 = vperm.slane %v533, %v948
    %v1039 = vsel %vm950, %v1038, %v1037
    %v1040 = vperm.slane %v536, %v952
    %v1041 = vsel %vm954, %v1040, %v1039
    %v1042 = vperm.slane %v539, %v956
    %v1043 = vsel %vm958, %v1042, %v1041
    %v1044 = vperm.slane %v542, %v960
    %v1045 = vsel %vm962, %v1044, %v1043
    %v1046 = vperm.slane %v545, %v964
    %v1047 = vsel %vm966, %v1046, %v1045
    %v1048 = vperm.slane %v548, %v968
    %v1049 = vsel %vm970, %v1048, %v1047
    %v1050 = vperm.slane %v551, %v972
    %v1051 = vsel %vm974, %v1050, %v1049
    %v1052 = vperm.slane %v554, %v976
    %v1053 = vsel %vm978, %v1052, %v1051
    %v1054 = vperm.slane %v557, %v980
    %v1055 = vsel %vm982, %v1054, %v1053
    %v1056 = vperm.slane %v560, %v984
    %v1057 = vsel %vm986, %v1056, %v1055
    %v1058 = vperm.slane %v563, %v988
    %v1059 = vsel %vm990, %v1058, %v1057
    %v1060 = vperm.slane %v566, %v992
    %v1061 = vsel %vm994, %v1060, %v1059
    %v1062 = vperm.slane %v569, %v996
    %v1063 = vsel %vm998, %v1062, %v1061
    %v1064 = vperm.slane %v572, %v1000
    %v1065 = vsel %vm1002, %v1064, %v1063
    %v1066 = vperm.slane %v575, %v942
    %v1067 = vperm.slane %v578, %v944
    %v1068 = vsel %vm946, %v1067, %v1066
    %v1069 = vperm.slane %v581, %v948
    %v1070 = vsel %vm950, %v1069, %v1068
    %v1071 = vperm.slane %v584, %v952
    %v1072 = vsel %vm954, %v1071, %v1070
    %v1073 = vperm.slane %v587, %v956
    %v1074 = vsel %vm958, %v1073, %v1072
    %v1075 = vperm.slane %v590, %v960
    %v1076 = vsel %vm962, %v1075, %v1074
    %v1077 = vperm.slane %v593, %v964
    %v1078 = vsel %vm966, %v1077, %v1076
    %v1079 = vperm.slane %v596, %v968
    %v1080 = vsel %vm970, %v1079, %v1078
    %v1081 = vperm.slane %v599, %v972
    %v1082 = vsel %vm974, %v1081, %v1080
    %v1083 = vperm.slane %v602, %v976
    %v1084 = vsel %vm978, %v1083, %v1082
    %v1085 = vperm.slane %v605, %v980
    %v1086 = vsel %vm982, %v1085, %v1084
    %v1087 = vperm.slane %v608, %v984
    %v1088 = vsel %vm986, %v1087, %v1086
    %v1089 = vperm.slane %v611, %v988
    %v1090 = vsel %vm990, %v1089, %v1088
    %v1091 = vperm.slane %v614, %v992
    %v1092 = vsel %vm994, %v1091, %v1090
    %v1093 = vperm.slane %v617, %v996
    %v1094 = vsel %vm998, %v1093, %v1092
    %v1095 = vperm.slane %v620, %v1000
    %v1096 = vsel %vm1002, %v1095, %v1094
    %v1097 = vperm.slane %v623, %v942
    %v1098 = vperm.slane %v626, %v944
    %v1099 = vsel %vm946, %v1098, %v1097
    %v1100 = vperm.slane %v629, %v948
    %v1101 = vsel %vm950, %v1100, %v1099
    %v1102 = vperm.slane %v632, %v952
    %v1103 = vsel %vm954, %v1102, %v1101
    %v1104 = vperm.slane %v635, %v956
    %v1105 = vsel %vm958, %v1104, %v1103
    %v1106 = vperm.slane %v638, %v960
    %v1107 = vsel %vm962, %v1106, %v1105
    %v1108 = vperm.slane %v641, %v964
    %v1109 = vsel %vm966, %v1108, %v1107
    %v1110 = vperm.slane %v644, %v968
    %v1111 = vsel %vm970, %v1110, %v1109
    %v1112 = vperm.slane %v647, %v972
    %v1113 = vsel %vm974, %v1112, %v1111
    %v1114 = vperm.slane %v650, %v976
    %v1115 = vsel %vm978, %v1114, %v1113
    %v1116 = vperm.slane %v653, %v980
    %v1117 = vsel %vm982, %v1116, %v1115
    %v1118 = vperm.slane %v656, %v984
    %v1119 = vsel %vm986, %v1118, %v1117
    %v1120 = vperm.slane %v659, %v988
    %v1121 = vsel %vm990, %v1120, %v1119
    %v1122 = vperm.slane %v662, %v992
    %v1123 = vsel %vm994, %v1122, %v1121
    %v1124 = vperm.slane %v665, %v996
    %v1125 = vsel %vm998, %v1124, %v1123
    %v1126 = vperm.slane %v668, %v1000
    %v1127 = vsel %vm1002, %v1126, %v1125
    %v1128 = vperm.slane %v671, %v942
    %v1129 = vperm.slane %v674, %v944
    %v1130 = vsel %vm946, %v1129, %v1128
    %v1131 = vperm.slane %v677, %v948
    %v1132 = vsel %vm950, %v1131, %v1130
    %v1133 = vperm.slane %v680, %v952
    %v1134 = vsel %vm954, %v1133, %v1132
    %v1135 = vperm.slane %v683, %v956
    %v1136 = vsel %vm958, %v1135, %v1134
    %v1137 = vperm.slane %v686, %v960
    %v1138 = vsel %vm962, %v1137, %v1136
    %v1139 = vperm.slane %v689, %v964
    %v1140 = vsel %vm966, %v1139, %v1138
    %v1141 = vperm.slane %v692, %v968
    %v1142 = vsel %vm970, %v1141, %v1140
    %v1143 = vperm.slane %v695, %v972
    %v1144 = vsel %vm974, %v1143, %v1142
    %v1145 = vperm.slane %v698, %v976
    %v1146 = vsel %vm978, %v1145, %v1144
    %v1147 = vperm.slane %v701, %v980
    %v1148 = vsel %vm982, %v1147, %v1146
    %v1149 = vperm.slane %v704, %v984
    %v1150 = vsel %vm986, %v1149, %v1148
    %v1151 = vperm.slane %v707, %v988
    %v1152 = vsel %vm990, %v1151, %v1150
    %v1153 = vperm.slane %v710, %v992
    %v1154 = vsel %vm994, %v1153, %v1152
    %v1155 = vperm.slane %v713, %v996
    %v1156 = vsel %vm998, %v1155, %v1154
    %v1157 = vperm.slane %v716, %v1000
    %v1158 = vsel %vm1002, %v1157, %v1156
    %v1159 = vperm.slane %v719, %v942
    %v1160 = vperm.slane %v722, %v944
    %v1161 = vsel %vm946, %v1160, %v1159
    %v1162 = vperm.slane %v725, %v948
    %v1163 = vsel %vm950, %v1162, %v1161
    %v1164 = vperm.slane %v728, %v952
    %v1165 = vsel %vm954, %v1164, %v1163
    %v1166 = vperm.slane %v731, %v956
    %v1167 = vsel %vm958, %v1166, %v1165
    %v1168 = vperm.slane %v734, %v960
    %v1169 = vsel %vm962, %v1168, %v1167
    %v1170 = vperm.slane %v737, %v964
    %v1171 = vsel %vm966, %v1170, %v1169
    %v1172 = vperm.slane %v740, %v968
    %v1173 = vsel %vm970, %v1172, %v1171
    %v1174 = vperm.slane %v743, %v972
    %v1175 = vsel %vm974, %v1174, %v1173
    %v1176 = vperm.slane %v746, %v976
    %v1177 = vsel %vm978, %v1176, %v1175
    %v1178 = vperm.slane %v749, %v980
    %v1179 = vsel %vm982, %v1178, %v1177
    %v1180 = vperm.slane %v752, %v984
    %v1181 = vsel %vm986, %v1180, %v1179
    %v1182 = vperm.slane %v755, %v988
    %v1183 = vsel %vm990, %v1182, %v1181
    %v1184 = vperm.slane %v758, %v992
    %v1185 = vsel %vm994, %v1184, %v1183
    %v1186 = vperm.slane %v761, %v996
    %v1187 = vsel %vm998, %v1186, %v1185
    %v1188 = vperm.slane %v764, %v1000
    %v1189 = vsel %vm1002, %v1188, %v1187
    %v1190 = vperm.slane %v767, %v942
    %v1191 = vperm.slane %v770, %v944
    %v1192 = vsel %vm946, %v1191, %v1190
    %v1193 = vperm.slane %v773, %v948
    %v1194 = vsel %vm950, %v1193, %v1192
    %v1195 = vperm.slane %v776, %v952
    %v1196 = vsel %vm954, %v1195, %v1194
    %v1197 = vperm.slane %v779, %v956
    %v1198 = vsel %vm958, %v1197, %v1196
    %v1199 = vperm.slane %v782, %v960
    %v1200 = vsel %vm962, %v1199, %v1198
    %v1201 = vperm.slane %v785, %v964
    %v1202 = vsel %vm966, %v1201, %v1200
    %v1203 = vperm.slane %v788, %v968
    %v1204 = vsel %vm970, %v1203, %v1202
    %v1205 = vperm.slane %v791, %v972
    %v1206 = vsel %vm974, %v1205, %v1204
    %v1207 = vperm.slane %v794, %v976
    %v1208 = vsel %vm978, %v1207, %v1206
    %v1209 = vperm.slane %v797, %v980
    %v1210 = vsel %vm982, %v1209, %v1208
    %v1211 = vperm.slane %v800, %v984
    %v1212 = vsel %vm986, %v1211, %v1210
    %v1213 = vperm.slane %v803, %v988
    %v1214 = vsel %vm990, %v1213, %v1212
    %v1215 = vperm.slane %v806, %v992
    %v1216 = vsel %vm994, %v1215, %v1214
    %v1217 = vperm.slane %v809, %v996
    %v1218 = vsel %vm998, %v1217, %v1216
    %v1219 = vperm.slane %v812, %v1000
    %v1220 = vsel %vm1002, %v1219, %v1218
    %vm1221 = vcmask 1041409
    %v1222 = vsel %vm1221, %v1034, %v1003
    %vm1223 = vcmask 1042434
    %v1224 = vsel %vm1223, %v1065, %v1222
    %vm1225 = vcmask 1043459
    %v1226 = vsel %vm1225, %v1096, %v1224
    %vm1227 = vcmask 1044484
    %v1228 = vsel %vm1227, %v1127, %v1226
    %vm1229 = vcmask 1045509
    %v1230 = vsel %vm1229, %v1158, %v1228
    %vm1231 = vcmask 1046534
    %v1232 = vsel %vm1231, %v1189, %v1230
    %vm1233 = vcmask 1047559
    %v1234 = vsel %vm1233, %v1220, %v1232
    %1236 = vst [vmem:[#allocation2] sm:$0xff] %v1234
    // Predicated region
    $region10: #{tpu_custom_call.1} parent=1 // pred_check
      _
    $region11: #{tpu_custom_call.1} parent=1 // pred_check_branch
      %1238 = sbr.rel (0) target = $region13
    $region12: #{tpu_custom_call.1} parent=1 // pred_region
      %1240 = vsyncadd [#allocation3], 0
      %s1242 = sshll.u32 [#allocation2], 4
      %s1243 = int_to_ptr.vmem [resolvable:$true] %s1242
      %s1244 = sshll.u32 %s2, 4
      %s1245 = int_to_ptr.hbm [resolvable:$true] %s1244
      %1247 = dma.vmem_to_hbm [thread:$0]  %s1243, 128, %s1245, [#allocation3]
    $region13: #{tpu_custom_call.1} parent=1 // pred_fallthru
      _
    // Predicated region
    $region14: #{tpu_custom_call.1} parent=1 // pred_check
      _
    $region15: #{tpu_custom_call.1} parent=1 // pred_check_branch
      %1249 = sbr.rel (0) target = $region17
    $region16: #{tpu_custom_call.1} parent=1 // pred_region
      %1251 = dma.done [#allocation3], 128
    $region17: #{tpu_custom_call.1} parent=1 // pred_fallthru
      _
    %1252 = vsyncpa [#allocation3], 1

</llo_original>
